<compile_context>
chip_gen: v6e
topology: v6e:2x2x1
jax: 0.10.0
libtpu: 0.0.40
codegen_flags: <defaults>
</compile_context>

<pallas_src>
import math
import jax
import jax.numpy as jnp
from jax import lax
from jax.experimental import pallas as pl
from jax.experimental.pallas import tpu as pltpu


# ----------------------------------------------------------------------------
# Shared tiled matmul + bias kernel (used for the hoisted input projection and
# for the decoder).  grid = (M/tm, N/tn, K/tk), f32 accumulator scratch.
# ----------------------------------------------------------------------------
def _matmul_bias_kernel(x_ref, w_ref, b_ref, o_ref, acc_ref):
    k = pl.program_id(2)

    @pl.when(k == 0)
    def _():
        acc_ref[...] = jnp.zeros_like(acc_ref)

    acc_ref[...] += jnp.dot(x_ref[...], w_ref[...],
                            preferred_element_type=jnp.float32)

    @pl.when(k == pl.num_programs(2) - 1)
    def _():
        o_ref[...] = (acc_ref[...] + b_ref[...]).astype(o_ref.dtype)


def _round_up(x, m):
    return ((x + m - 1) // m) * m


def _pad_axis(a, axis, target):
    pad = target - a.shape[axis]
    if pad == 0:
        return a
    widths = [(0, 0)] * a.ndim
    widths[axis] = (0, pad)
    return jnp.pad(a, widths)


def matmul_bias(x, w_t, b, *, tm=256, tn=256, tk=512, out_dtype=jnp.float32):
    """x:(M,K) @ w_t:(K,N) + b:(N,) -> (M,N), tiled over (M, N, K)."""
    M, K = x.shape
    Kw, N = w_t.shape
    assert K == Kw
    # Clamp tiles to the (padded) problem size; keep sublane/lane alignment.
    tm = min(tm, _round_up(M, 8))
    tn = min(tn, _round_up(N, 128))
    tk = min(tk, _round_up(K, 128))
    Mp, Np, Kp = _round_up(M, tm), _round_up(N, tn), _round_up(K, tk)
    xp = _pad_axis(_pad_axis(x, 0, Mp), 1, Kp)
    wp = _pad_axis(_pad_axis(w_t, 0, Kp), 1, Np)
    bp = _pad_axis(b.reshape(1, N), 1, Np)

    out = pl.pallas_call(
        _matmul_bias_kernel,
        out_shape=jax.ShapeDtypeStruct((Mp, Np), out_dtype),
        grid=(Mp // tm, Np // tn, Kp // tk),
        in_specs=[pl.BlockSpec((tm, tk), lambda i, j, k: (i, k)),
                  pl.BlockSpec((tk, tn), lambda i, j, k: (k, j)),
                  pl.BlockSpec((1, tn), lambda i, j, k: (0, j))],
        out_specs=pl.BlockSpec((tm, tn), lambda i, j, k: (i, j)),
        scratch_shapes=[pltpu.VMEM((tm, tn), jnp.float32)],
        compiler_params=pltpu.CompilerParams(
            dimension_semantics=("parallel", "parallel", "arbitrary")),
    )(xp, wp, bp)
    return out[:M, :N]


# ----------------------------------------------------------------------------
# GRU recurrence kernel.  The input projections gi = x @ W_i^T + b_ih are
# precomputed (hoisted); the kernel only does the fused recurrent matmul
# h_prev @ (H, 3H) per timestep.  Grid iterates over blocks of T_BLK timesteps
# (sequential recurrence, hidden state carried in a VMEM scratch accumulator).
# Packed-sequence semantics: hidden state freezes past each sequence's length
# and padded outputs are zeroed (like pad_packed_sequence).
# ----------------------------------------------------------------------------
def _gru_layer_kernel(gi_ref, len_ref, h0_ref, wh_ref, bh_ref,
                      y_ref, hlast_ref, h_scratch):
    s = pl.program_id(0)
    t_blk = gi_ref.shape[0]
    H = hlast_ref.shape[-1]

    @pl.when(s == 0)
    def _():
        h_scratch[...] = h0_ref[...].astype(jnp.float32)

    lens = len_ref[...].astype(jnp.int32)      # (B, 1), constant-index (loaded once)
    wh = wh_ref[...]                           # (H, 3H) fused recurrent weights
    bh = bh_ref[...]                           # (1, 3H) fused recurrent bias

    def step(i, h_prev):
        t = s * t_blk + i
        gi_t = gi_ref[i].astype(jnp.float32)   # (B, 3H) precomputed input projections
        gh = jnp.dot(h_prev, wh, preferred_element_type=jnp.float32) + bh   # (B, 3H)
        r = jax.nn.sigmoid(gi_t[:, 0:H] + gh[:, 0:H])
        z = jax.nn.sigmoid(gi_t[:, H:2 * H] + gh[:, H:2 * H])
        n = jnp.tanh(gi_t[:, 2 * H:3 * H] + r * gh[:, 2 * H:3 * H])
        h_new = (1.0 - z) * n + z * h_prev
        m = (t < lens).astype(jnp.float32)     # (B, 1): 1.0 if t < length[b]
        h = m * h_new + (1.0 - m) * h_prev     # freeze hidden past sequence length
        y_ref[i] = (m * h).astype(y_ref.dtype)  # pad_packed: zeros past length
        return h

    h = lax.fori_loop(0, t_blk, step, h_scratch[...], unroll=True)
    h_scratch[...] = h

    @pl.when(s == pl.num_programs(0) - 1)
    def _():
        hlast_ref[...] = h.astype(hlast_ref.dtype)


def gru_layer(gi, lengths, h0, wh_cat, bh_cat, *, t_blk=8):
    """One GRU layer given precomputed input projections.

    gi:     (S, B, 3H)   x @ W_ih^T + b_ih  (gate order r, z, n)
    h0:     (B, H)
    wh_cat: (H, 3H)      W_hh^T (gate order r, z, n)
    bh_cat: (1, 3H)
    Returns y:(S, B, H), h_last:(B, H).
    """
    S, B, H3 = gi.shape
    H = H3 // 3
    t_blk = min(t_blk, S)
    Sp = _round_up(S, t_blk)
    gi_p = _pad_axis(gi, 0, Sp)                # padded steps are masked off in-kernel
    lens2d = lengths.reshape(B, 1).astype(jnp.int32)

    # NOTE: weight/bias/h0/lengths inputs have constant index maps, so the
    # pipeline fetches them once (no per-step re-DMA).
    y, h_last = pl.pallas_call(
        _gru_layer_kernel,
        out_shape=(jax.ShapeDtypeStruct((Sp, B, H), jnp.float32),
                   jax.ShapeDtypeStruct((B, H), jnp.float32)),
        grid=(Sp // t_blk,),
        in_specs=[
            pl.BlockSpec((t_blk, B, H3), lambda s: (s, 0, 0)),   # gi block
            pl.BlockSpec((B, 1), lambda s: (0, 0)),              # lengths
            pl.BlockSpec((B, H), lambda s: (0, 0)),              # h0
            pl.BlockSpec((H, H3), lambda s: (0, 0)),             # fused W_hh
            pl.BlockSpec((1, H3), lambda s: (0, 0)),             # fused b_hh
        ],
        out_specs=(pl.BlockSpec((t_blk, B, H), lambda s: (s, 0, 0)),
                   pl.BlockSpec((B, H), lambda s: (0, 0))),
        scratch_shapes=[pltpu.VMEM((B, H), jnp.float32)],
        compiler_params=pltpu.CompilerParams(
            dimension_semantics=("arbitrary",)),
    )(gi_p, lens2d, h0, wh_cat, bh_cat)
    return y[:S], h_last


# ----------------------------------------------------------------------------
# Full LMModel forward.
# ----------------------------------------------------------------------------
def lm_model_forward(params, nlayers, tokens, lengths, hidden):
    S, B = tokens.shape
    H = params["w_hh_l0"].shape[1]
    # Embedding lookup (gather) kept as plain-JAX glue; nn.Dropout is identity in eval mode.
    emb = params["encoder_w"][tokens]                                   # (S, B, ninput)

    layer_in = emb
    h_lasts = []
    for l in range(nlayers):
        w_ih = params[f"w_ih_l{l}"]       # (3H, in_dim), gate order r, z, n
        w_hh = params[f"w_hh_l{l}"]       # (3H, H)
        b_ih = params[f"b_ih_l{l}"]
        b_hh = params[f"b_hh_l{l}"]
        I = layer_in.shape[-1]
        # Hoisted input projection: one large tiled MXU matmul over all timesteps.
        gi = matmul_bias(layer_in.reshape(S * B, I), w_ih.T, b_ih).reshape(S, B, 3 * H)
        y, h_last = gru_layer(gi, lengths, hidden[l],
                              w_hh.T, b_hh.reshape(1, 3 * H))
        layer_in = y                      # inter-layer dropout: identity in eval mode
        h_lasts.append(h_last)

    V = params["decoder_w"].shape[0]
    decoded = matmul_bias(layer_in.reshape(S * B, H),
                          params["decoder_w"].T,
                          params["decoder_b"]).reshape(S, B, V)
    return decoded, jnp.stack(h_lasts, axis=0)


# ----------------------------------------------------------------------------
# Pure-JAX reference (same masked-GRU / packed-sequence semantics).
# ----------------------------------------------------------------------------
def reference_forward(params, nlayers, tokens, lengths, hidden):
    emb = params["encoder_w"][tokens]
    S, B, _ = emb.shape
    H = params["w_hh_l0"].shape[1]
    mask = (jnp.arange(S)[:, None] < lengths[None, :]).astype(jnp.float32)[..., None]
    layer_in = emb
    h_out = []
    for l in range(nlayers):
        w_ih, w_hh = params[f"w_ih_l{l}"], params[f"w_hh_l{l}"]
        b_ih, b_hh = params[f"b_ih_l{l}"], params[f"b_hh_l{l}"]
        h = hidden[l]
        ys = []
        for t in range(S):
            x_t = layer_in[t]
            gi = x_t @ w_ih.T + b_ih
            gh = h @ w_hh.T + b_hh
            r = jax.nn.sigmoid(gi[:, :H] + gh[:, :H])
            z = jax.nn.sigmoid(gi[:, H:2 * H] + gh[:, H:2 * H])
            n = jnp.tanh(gi[:, 2 * H:] + r * gh[:, 2 * H:])
            h_new = (1 - z) * n + z * h
            m = mask[t]
            h = m * h_new + (1 - m) * h
            ys.append(m * h)
        layer_in = jnp.stack(ys, 0)
        h_out.append(h)
    dec = layer_in @ params["decoder_w"].T + params["decoder_b"]
    return dec, jnp.stack(h_out, 0)


def init_params(key, nvoc, ninput, nhid, nlayers):
    k = 1.0 / math.sqrt(nhid)
    keys = jax.random.split(key, 2 + 4 * nlayers)
    params = {
        "encoder_w": jax.random.uniform(keys[0], (nvoc, ninput), jnp.float32, -k, k),
        "decoder_w": jax.random.uniform(keys[1], (nvoc, nhid), jnp.float32, -k, k),
        "decoder_b": jnp.zeros((nvoc,), jnp.float32),
    }
    for l in range(nlayers):
        in_dim = ninput if l == 0 else nhid
        params[f"w_ih_l{l}"] = jax.random.uniform(keys[2 + 4 * l + 0], (3 * nhid, in_dim),
                                                  jnp.float32, -k, k)
        params[f"w_hh_l{l}"] = jax.random.uniform(keys[2 + 4 * l + 1], (3 * nhid, nhid),
                                                  jnp.float32, -k, k)
        params[f"b_ih_l{l}"] = jax.random.uniform(keys[2 + 4 * l + 2], (3 * nhid,),
                                                  jnp.float32, -k, k)
        params[f"b_hh_l{l}"] = jax.random.uniform(keys[2 + 4 * l + 3], (3 * nhid,),
                                                  jnp.float32, -k, k)
    return params


if __name__ == "__main__":
    # Lane/sublane-aligned small shapes: B multiple of 8, H multiple of 128.
    nvoc, ninput, nhid, nlayers = 256, 64, 128, 2
    S, B = 16, 8

    key = jax.random.PRNGKey(0)
    pkey, tkey = jax.random.split(key)
    params = init_params(pkey, nvoc, ninput, nhid, nlayers)

    tokens = jax.random.randint(tkey, (S, B), 0, nvoc, dtype=jnp.int32)     # (S, B)
    lengths = jnp.array([16, 15, 12, 10, 9, 8, 5, 3], dtype=jnp.int32)      # sorted decreasing
    hidden0 = jnp.zeros((nlayers, B, nhid), jnp.float32)                    # init_hidden

    decoded, h_n = lm_model_forward(params, nlayers, tokens, lengths, hidden0)
    jax.block_until_ready((decoded, h_n))

    ref_dec, ref_h = reference_forward(params, nlayers, tokens, lengths, hidden0)
    assert decoded.shape == (S, B, nvoc) and h_n.shape == (nlayers, B, nhid)
    assert jnp.allclose(decoded, ref_dec, atol=1e-4), "decoded mismatch vs reference"
    assert jnp.allclose(h_n, ref_h, atol=1e-4), "hidden mismatch vs reference"
    print("KERNEL_OK")
</pallas_src>

<mosaic_0001>
module attributes {stable_mosaic.version = 11 : i64} {
  func.func @_matmul_bias_kernel(%arg0: i32, %arg1: i32, %arg2: i32, %arg3: memref<128x128xf32, #tpu.memory_space<vmem>>, %arg4: memref<128x256xf32, #tpu.memory_space<vmem>>, %arg5: memref<1x256xf32, #tpu.memory_space<vmem>>, %arg6: memref<128x256xf32, #tpu.memory_space<vmem>>, %arg7: memref<128x256xf32, #tpu.memory_space<vmem>>) attributes {dimension_semantics = [#tpu.dimension_semantics<parallel>, #tpu.dimension_semantics<parallel>, #tpu.dimension_semantics<arbitrary>], iteration_bounds = array<i64: 1, 2, 1>, scalar_prefetch = 0 : i64, scratch_operands = 1 : i64, tpu.core_type = #tpu.core_type<tc>, window_params = [{transform_indices = @transform_0, window_bounds = array<i64: 128, 128>}, {transform_indices = @transform_1, window_bounds = array<i64: 128, 256>}, {transform_indices = @transform_2, window_bounds = array<i64: 1, 256>}, {transform_indices = @transform_3, window_bounds = array<i64: 128, 256>}]} {
    %c0_i32 = arith.constant 0 : i32
    %0 = arith.cmpi eq, %arg2, %c0_i32 : i32
    %1 = arith.extui %0 : i1 to i32
    %c0_i32_0 = arith.constant 0 : i32
    %2 = arith.cmpi ne, %1, %c0_i32_0 : i32
    scf.if %2 {
      %cst_10 = arith.constant 0.000000e+00 : f32
      %12 = vector.broadcast %cst_10 : f32 to vector<128x256xf32>
      %c0_11 = arith.constant 0 : index
      %c0_12 = arith.constant 0 : index
      %13 = vector.load %arg7[%c0_11, %c0_12] : memref<128x256xf32, #tpu.memory_space<vmem>>, vector<128x256xf32>
      tpu.vector_store %arg7[%c0_11, %c0_12], %12 {strides = array<i32>} : memref<128x256xf32, #tpu.memory_space<vmem>>, vector<128x256xf32>,
    } else {
    }
    %c0 = arith.constant 0 : index
    %c0_1 = arith.constant 0 : index
    %3 = vector.load %arg7[%c0, %c0_1] : memref<128x256xf32, #tpu.memory_space<vmem>>, vector<128x256xf32>
    %c0_2 = arith.constant 0 : index
    %c0_3 = arith.constant 0 : index
    %4 = vector.load %arg3[%c0_2, %c0_3] : memref<128x128xf32, #tpu.memory_space<vmem>>, vector<128x128xf32>
    %c0_4 = arith.constant 0 : index
    %c0_5 = arith.constant 0 : index
    %5 = vector.load %arg4[%c0_4, %c0_5] : memref<128x256xf32, #tpu.memory_space<vmem>>, vector<128x256xf32>
    %cst = arith.constant dense<0.000000e+00> : vector<128x256xf32>
    %6 = tpu.matmul %4, %5, %cst {dimension_numbers = #tpu.dot_dimension_numbers<[1], [0], [0], [1], [0, 0, 1, 1], [], []>} : vector<128x128xf32>, vector<128x256xf32>, vector<128x256xf32> -> vector<128x256xf32>
    %7 = arith.addf %3, %6 : vector<128x256xf32>
    %c0_6 = arith.constant 0 : index
    %c0_7 = arith.constant 0 : index
    %8 = vector.load %arg7[%c0_6, %c0_7] : memref<128x256xf32, #tpu.memory_space<vmem>>, vector<128x256xf32>
    tpu.vector_store %arg7[%c0_6, %c0_7], %7 {strides = array<i32>} : memref<128x256xf32, #tpu.memory_space<vmem>>, vector<128x256xf32>,
    %c0_i32_8 = arith.constant 0 : i32
    %9 = arith.cmpi eq, %arg2, %c0_i32_8 : i32
    %10 = arith.extui %9 : i1 to i32
    %c0_i32_9 = arith.constant 0 : i32
    %11 = arith.cmpi ne, %10, %c0_i32_9 : i32
    scf.if %11 {
      %c0_10 = arith.constant 0 : index
      %c0_11 = arith.constant 0 : index
      %12 = vector.load %arg7[%c0_10, %c0_11] : memref<128x256xf32, #tpu.memory_space<vmem>>, vector<128x256xf32>
      %c0_12 = arith.constant 0 : index
      %c0_13 = arith.constant 0 : index
      %13 = vector.load %arg5[%c0_12, %c0_13] : memref<1x256xf32, #tpu.memory_space<vmem>>, vector<1x256xf32>
      %14 = vector.broadcast %13 : vector<1x256xf32> to vector<128x256xf32>
      %15 = arith.addf %12, %14 : vector<128x256xf32>
      %c0_14 = arith.constant 0 : index
      %c0_15 = arith.constant 0 : index
      %16 = vector.load %arg6[%c0_14, %c0_15] : memref<128x256xf32, #tpu.memory_space<vmem>>, vector<128x256xf32>
      tpu.vector_store %arg6[%c0_14, %c0_15], %15 {strides = array<i32>} : memref<128x256xf32, #tpu.memory_space<vmem>>, vector<128x256xf32>,
    } else {
    }
    return
  }
  func.func @transform_0(%arg0: i32, %arg1: i32, %arg2: i32) -> (i32, i32) {
    %c0_i32 = arith.constant 0 : i32
    return %arg0, %arg2 : i32, i32
  }
  func.func @transform_1(%arg0: i32, %arg1: i32, %arg2: i32) -> (i32, i32) {
    %c0_i32 = arith.constant 0 : i32
    return %arg2, %arg1 : i32, i32
  }
  func.func @transform_2(%arg0: i32, %arg1: i32, %arg2: i32) -> (i32, i32) {
    %c0_i32 = arith.constant 0 : i32
    %c0_i32_0 = arith.constant 0 : i32
    return %c0_i32, %arg1 : i32, i32
  }
  func.func @transform_3(%arg0: i32, %arg1: i32, %arg2: i32) -> (i32, i32) {
    %c0_i32 = arith.constant 0 : i32
    return %arg0, %arg1 : i32, i32
  }
}

</mosaic_0001>

<llo_original>
// kernel: tpu_custom_call.1
$region0: #{tpu_custom_call.1}
  #allocation0 [shape = 'u32[]', space=smem, size = 0x4, offset = 0x4, fixed_abs, tag = 'smem constant byte address 0x4 - core index']
  #allocation1 [shape = 'u32[144,128]{1,0:T(1,128)}', space=vmem, size = 0x12000, scoped, tag = 'internal scratch']
  #allocation2 [shape = 'f32[128,256]{1,0:T(8,128)}', space=vmem, size = 0x20000, scoped, tag = 'scratch operand']
  %s0 = inlined_call_operand.hbm [shape: f32[128,128], index: 0, kind: input, shape index: {}]
  %s1 = inlined_call_operand.hbm [shape: f32[128,512], index: 1, kind: input, shape index: {}]
  %s2 = inlined_call_operand.hbm [shape: f32[1,512], index: 2, kind: input, shape index: {}]
  %s3 = inlined_call_operand.hbm [shape: f32[128,512], index: 3, kind: output, shape index: {}]
  %s4 = sld [smem:[#allocation0]]
  $region65: #{tpu_custom_call.1} parent=0
    _
  %s6 = ssub.s32 1, %s4
  %s7 = scalar_select 0, %s6, %s4
  $region1: #{tpu_custom_call.1} parent=0
    #allocation3 [shape = 'u8[65536]{0}', space=vmem, size = 0x10000, scoped, tag = 'input window, operand 0, single buffered']
    #allocation4 [shape = 's32[2]{0}', space=sflag, size = 0x8, scoped, tag = 'scoped memory for tpu_custom_call.1']
    #allocation5 [shape = 's32[2]{0}', space=sflag, size = 0x8, scoped, tag = 'scoped memory for tpu_custom_call.1']
    #allocation6 [shape = 'u8[262144]{0}', space=vmem, size = 0x40000, scoped, tag = 'input window, operand 1']
    #allocation7 [shape = 's32[2]{0}', space=sflag, size = 0x8, scoped, tag = 'scoped memory for tpu_custom_call.1']
    #allocation8 [shape = 'u8[2048]{0}', space=vmem, size = 0x800, scoped, tag = 'input window, operand 2']
    #allocation9 [shape = 'u8[262144]{0}', space=vmem, size = 0x40000, scoped, tag = 'output window, operand 0']
    %8 = vsyncpa [#allocation4], 0
    %9 = vsyncpa [#allocation7], 0
    %s10 = scalar_lea.sflag [#allocation7], 1
    %11 = vsyncpa %s10, 0
    %12 = vsyncpa [#allocation5], 0
    %s13 = scalar_lea.sflag [#allocation5], 1
    %14 = vsyncpa %s13, 0
    loop: start=0, step=1, limit=4
    $region2: #{tpu_custom_call.1} parent=1 // loop_pre_header
      _
    $region3: #{tpu_custom_call.1} parent=1 // loop_header
      %s16 = sphi 0, %s20
      %p17 = scmp.ge.s32.totalorder %s16, 4
      %s23 = sphi 0, %s42
      %s24 = sphi 0, %s38
      %s25 = sphi 0, %s34
      %s26 = sphi 0, %s23
      %s27 = sphi 0, %s24
      %s28 = sphi 0, %s25
      %s29 = sphi 0, %s26
      %s30 = sphi 0, %s27
      %s31 = sphi 0, %s28
      %s47 = sphi 0, %s49
      %s50 = sphi 0, %s47
      %s51 = sphi 0, %s50
      %s67 = sphi 0, %s51
      %s75 = sphi 0, %s77
      %s78 = sphi 0, %s75
      %s79 = sphi 0, %s78
      %s95 = sphi 0, %s79
      %s101 = sphi 0, %s103
      %s104 = sphi 0, %s101
      %s105 = sphi 0, %s104
      %s121 = sphi 0, %s105
      %s129 = sphi 0, %s131
      %s132 = sphi 0, %s129
      %s133 = sphi 0, %s132
      %s149 = sphi 0, %s133
    $region4: #{tpu_custom_call.1} parent=1 // loop_header_branch
      %19 = sbr.rel (%p17) target = $region8
    $region5: #{tpu_custom_call.1} parent=1 // loop_body
      %s21 = ssub.s32 %s16, 1
      %s22 = ssub.s32 %s16, 2
      %s32 = sadd.s32 1, %s25
      %p33 = scmp.ge.s32.totalorder %s32, 1
      %s34 = scalar_select %p33, 0, %s32
      %s35 = sadd.s32 1, %s24
      %s36 = scalar_select %p33, %s35, %s24
      %p37 = scmp.ge.s32.totalorder %s36, 2
      %s38 = scalar_select %p37, 0, %s36
      %s39 = sadd.s32 1, %s23
      %s40 = scalar_select %p37, %s39, %s23
      %p41 = scmp.ge.s32.totalorder %s40, 1
      %s42 = scalar_select %p41, 0, %s40
      %s43 = ssub.s32 %s23, %s42
      %s44 = ssub.s32 %s25, %s34
      %s45 = sor.u32 %s43, %s44
      %p46 = scmp.eq.s32.totalorder %s45, 0
      %s48 = sadd.s32 %s47, 1
      %s49 = scalar_select %p46, %s47, %s48
      %p52 = pneg %p46
      %p53 = scmp.eq.s32.totalorder %s16, 1
      %p54 = por %p52, %p53
      %p55 = scmp.ne.s32.totalorder %s47, %s50
      %p56 = scmp.eq.s32.totalorder %s16, 0
      %p57 = por %p55, %p56
      %p58 = scmp.ne.s32.totalorder %s47, %s50
      %p59 = scmp.eq.s32.totalorder %s21, 1
      %p60 = por %p58, %p59
      %p61 = scmp.ne.s32.totalorder %s50, %s51
      %p62 = scmp.eq.s32.totalorder %s21, 0
      %p63 = por %p61, %p62
      %p64 = scmp.ne.s32.totalorder %s50, %s51
      %p65 = scmp.eq.s32.totalorder %s22, 1
      %p66 = por %p64, %p65
      %p68 = scmp.ne.s32.totalorder %s51, %s67
      %p69 = scmp.eq.s32.totalorder %s22, 0
      %p70 = por %p68, %p69
      %s71 = ssub.s32 %s25, %s34
      %s72 = ssub.s32 %s24, %s38
      %s73 = sor.u32 %s71, %s72
      %p74 = scmp.eq.s32.totalorder %s73, 0
      %s76 = sadd.s32 %s75, 1
      %s77 = scalar_select %p74, %s75, %s76
      %p80 = pneg %p74
      %p81 = scmp.eq.s32.totalorder %s16, 1
      %p82 = por %p80, %p81
      %p83 = scmp.ne.s32.totalorder %s75, %s78
      %p84 = scmp.eq.s32.totalorder %s16, 0
      %p85 = por %p83, %p84
      %p86 = scmp.ne.s32.totalorder %s75, %s78
      %p87 = scmp.eq.s32.totalorder %s21, 1
      %p88 = por %p86, %p87
      %p89 = scmp.ne.s32.totalorder %s78, %s79
      %p90 = scmp.eq.s32.totalorder %s21, 0
      %p91 = por %p89, %p90
      %p92 = scmp.ne.s32.totalorder %s78, %s79
      %p93 = scmp.eq.s32.totalorder %s22, 1
      %p94 = por %p92, %p93
      %p96 = scmp.ne.s32.totalorder %s79, %s95
      %p97 = scmp.eq.s32.totalorder %s22, 0
      %p98 = por %p96, %p97
      %s99 = ssub.s32 %s24, %s38
      %p100 = scmp.eq.s32.totalorder %s99, 0
      %s102 = sadd.s32 %s101, 1
      %s103 = scalar_select %p100, %s101, %s102
      %p106 = pneg %p100
      %p107 = scmp.eq.s32.totalorder %s16, 1
      %p108 = por %p106, %p107
      %p109 = scmp.ne.s32.totalorder %s101, %s104
      %p110 = scmp.eq.s32.totalorder %s16, 0
      %p111 = por %p109, %p110
      %p112 = scmp.ne.s32.totalorder %s101, %s104
      %p113 = scmp.eq.s32.totalorder %s21, 1
      %p114 = por %p112, %p113
      %p115 = scmp.ne.s32.totalorder %s104, %s105
      %p116 = scmp.eq.s32.totalorder %s21, 0
      %p117 = por %p115, %p116
      %p118 = scmp.ne.s32.totalorder %s104, %s105
      %p119 = scmp.eq.s32.totalorder %s22, 1
      %p120 = por %p118, %p119
      %p122 = scmp.ne.s32.totalorder %s105, %s121
      %p123 = scmp.eq.s32.totalorder %s22, 0
      %p124 = por %p122, %p123
      %s125 = ssub.s32 %s23, %s42
      %s126 = ssub.s32 %s24, %s38
      %s127 = sor.u32 %s125, %s126
      %p128 = scmp.eq.s32.totalorder %s127, 0
      %s130 = sadd.s32 %s129, 1
      %s131 = scalar_select %p128, %s129, %s130
      %p134 = pneg %p128
      %p135 = scmp.eq.s32.totalorder %s16, 1
      %p136 = por %p134, %p135
      %p137 = scmp.ne.s32.totalorder %s129, %s132
      %p138 = scmp.eq.s32.totalorder %s16, 0
      %p139 = por %p137, %p138
      %p140 = scmp.ne.s32.totalorder %s129, %s132
      %p141 = scmp.eq.s32.totalorder %s21, 1
      %p142 = por %p140, %p141
      %p143 = scmp.ne.s32.totalorder %s132, %s133
      %p144 = scmp.eq.s32.totalorder %s21, 0
      %p145 = por %p143, %p144
      %p146 = scmp.ne.s32.totalorder %s132, %s133
      %p147 = scmp.eq.s32.totalorder %s22, 1
      %p148 = por %p146, %p147
      %p150 = scmp.ne.s32.totalorder %s133, %s149
      %p151 = scmp.eq.s32.totalorder %s22, 0
      %p152 = por %p150, %p151
      %p153 = scmp.le.s32.totalorder 1, %s16
      %p154 = scmp.lt.s32.totalorder %s16, 3
      %p155 = pnand %p153, %p154
      %p156 = pneg %p155
      // Predicated region
      $region9: #{tpu_custom_call.1} parent=5 // pred_check
        _
      $region10: #{tpu_custom_call.1} parent=5 // pred_check_branch
        %158 = sbr.rel (%p155) target = $region12
      $region11: #{tpu_custom_call.1} parent=5 // pred_region
        %s159 = ssub.s32 %s16, 1
        // Predicated region
        $region13: #{tpu_custom_call.1} parent=11 // pred_check
          %p160 = pneg %p63
        $region14: #{tpu_custom_call.1} parent=11 // pred_check_branch
          %162 = sbr.rel (%p160) target = $region16
        $region15: #{tpu_custom_call.1} parent=11 // pred_region
          %s163 = smul.u32 16, %s26
          %s165 = ssub.s32 2048, 2048
          %166 = vsyncadd [#allocation4], %s165
          %s167 = sadd.s32 %s28, %s163
          %s168 = smul.addr %s167, 128
          %s169 = scalar_lea.hbm %s0, %s168
          %s170 = sshll.u32 [#allocation3], 4
          %s171 = int_to_ptr.vmem [resolvable:$true] %s170
          %176 = dma.hbm_to_vmem [thread:$0]  %s169, 2048, %s171, [#allocation4], 128, 128, 8
        $region16: #{tpu_custom_call.1} parent=11 // pred_fallthru
          _
      $region12: #{tpu_custom_call.1} parent=5 // pred_fallthru
        _
      %p177 = scmp.lt.s32.totalorder %s16, 2
      // Predicated region
      $region17: #{tpu_custom_call.1} parent=5 // pred_check
        %p178 = pneg %p177
      $region18: #{tpu_custom_call.1} parent=5 // pred_check_branch
        %180 = sbr.rel (%p178) target = $region20
      $region19: #{tpu_custom_call.1} parent=5 // pred_region
        // Predicated region
        $region21: #{tpu_custom_call.1} parent=19 // pred_check
          %p181 = pneg %p85
        $region22: #{tpu_custom_call.1} parent=19 // pred_check_branch
          %183 = sbr.rel (%p181) target = $region24
        $region23: #{tpu_custom_call.1} parent=19 // pred_region
          %s184 = sand.u32 %s16, 1
          %s185 = scalar_lea.sflag [#allocation7], %s184
          %s186 = sand.u32 %s75, 1
          %s187 = smul.addr %s186, 256
          %s188 = scalar_lea.vmem [#allocation6], %s187
          %s189 = smul.u32 16, %s25
          %s190 = smul.u32 2, %s24
          %s192 = ssub.s32 4096, 4096
          %193 = vsyncadd %s185, %s192
          %s194 = smul.addr %s189, 4
          %s195 = sadd.s32 %s190, %s194
          %s196 = smul.addr %s195, 128
          %s197 = scalar_lea.hbm %s1, %s196
          %s198 = sshll.u32 %s188, 4
          %s199 = int_to_ptr.vmem [resolvable:$true] %s198
          %204 = dma.hbm_to_vmem [thread:$0]  %s197, 4096, %s199, %s185, 512, 256, 16
        $region24: #{tpu_custom_call.1} parent=19 // pred_fallthru
          _
        // Predicated region
        $region25: #{tpu_custom_call.1} parent=19 // pred_check
          %p205 = pneg %p111
        $region26: #{tpu_custom_call.1} parent=19 // pred_check_branch
          %207 = sbr.rel (%p205) target = $region28
        $region27: #{tpu_custom_call.1} parent=19 // pred_region
          %s208 = sand.u32 %s16, 1
          %s209 = scalar_lea.sflag [#allocation7], %s208
          %s210 = sand.u32 %s101, 1
          %s211 = smul.addr %s210, 2
          %s212 = scalar_lea.vmem [#allocation8], %s211
          %s213 = smul.u32 2, %s24
          %s215 = ssub.s32 32, 32
          %216 = vsyncadd %s209, %s215
          %s217 = smul.addr %s213, 16
          %s218 = scalar_lea.hbm %s2, %s217
          %s220 = sshll.u32 %s212, 4
          %s221 = int_to_ptr.vmem [resolvable:$true] %s220
          %223 = dma.hbm_to_vmem [thread:$0]  %s218, 32, %s221, %s209
        $region28: #{tpu_custom_call.1} parent=19 // pred_fallthru
          _
      $region20: #{tpu_custom_call.1} parent=5 // pred_fallthru
        _
      %p224 = scmp.le.s32.totalorder 1, %s16
      %p225 = scmp.lt.s32.totalorder %s16, 3
      %p226 = pnand %p224, %p225
      %p227 = pneg %p226
      // Predicated region
      $region29: #{tpu_custom_call.1} parent=5 // pred_check
        _
      $region30: #{tpu_custom_call.1} parent=5 // pred_check_branch
        %229 = sbr.rel (%p226) target = $region32
      $region31: #{tpu_custom_call.1} parent=5 // pred_region
        %s230 = ssub.s32 %s16, 1
        // Predicated region
        $region33: #{tpu_custom_call.1} parent=31 // pred_check
          %p231 = pneg %p63
        $region34: #{tpu_custom_call.1} parent=31 // pred_check_branch
          %233 = sbr.rel (%p231) target = $region36
        $region35: #{tpu_custom_call.1} parent=31 // pred_region
          %234 = dma.done [#allocation4], 2048
        $region36: #{tpu_custom_call.1} parent=31 // pred_fallthru
          _
        %s235 = sand.u32 %s21, 1
        %s236 = scalar_lea.sflag [#allocation7], %s235
        %s237 = sand.u32 %s78, 1
        %s238 = smul.addr %s237, 256
        %s239 = scalar_lea.vmem [#allocation6], %s238
        // Predicated region
        $region37: #{tpu_custom_call.1} parent=31 // pred_check
          %p240 = pneg %p91
        $region38: #{tpu_custom_call.1} parent=31 // pred_check_branch
          %242 = sbr.rel (%p240) target = $region40
        $region39: #{tpu_custom_call.1} parent=31 // pred_region
          %243 = dma.done %s236, 4096
        $region40: #{tpu_custom_call.1} parent=31 // pred_fallthru
          _
        %s244 = sand.u32 %s21, 1
        %s245 = scalar_lea.sflag [#allocation7], %s244
        %s246 = sand.u32 %s104, 1
        %s247 = smul.addr %s246, 2
        %s248 = scalar_lea.vmem [#allocation8], %s247
        // Predicated region
        $region41: #{tpu_custom_call.1} parent=31 // pred_check
          %p249 = pneg %p117
        $region42: #{tpu_custom_call.1} parent=31 // pred_check_branch
          %251 = sbr.rel (%p249) target = $region44
        $region43: #{tpu_custom_call.1} parent=31 // pred_region
          %252 = dma.done %s245, 32
        $region44: #{tpu_custom_call.1} parent=31 // pred_fallthru
          _
        %p253 = pneg %p63
        %p254 = pneg %p60
        %s255 = sand.u32 %s21, 1
        %s256 = scalar_lea.sflag [#allocation7], %s255
        %s257 = sand.u32 %s78, 1
        %s258 = smul.addr %s257, 256
        %s259 = scalar_lea.vmem [#allocation6], %s258
        %p260 = pneg %p91
        %p261 = pneg %p88
        %s262 = sand.u32 %s21, 1
        %s263 = scalar_lea.sflag [#allocation7], %s262
        %s264 = sand.u32 %s104, 1
        %s265 = smul.addr %s264, 2
        %s266 = scalar_lea.vmem [#allocation8], %s265
        %p267 = pneg %p117
        %p268 = pneg %p114
        %p269 = pneg %p145
        %p270 = pneg %p142
        %s271 = sand.u32 %s132, 1
        %s272 = scalar_lea.sflag [#allocation5], %s271
        %s273 = sand.u32 %s132, 1
        %s274 = smul.addr %s273, 256
        %s275 = scalar_lea.vmem [#allocation9], %s274
        %s276 = smul.u32 16, %s26
        %s277 = smul.u32 16, %s28
        %s278 = smul.u32 2, %s27
        %s279 = smul.u32 2, %s27
        %s280 = smul.u32 16, %s26
        %s281 = smul.u32 2, %s27
        %p282 = scmp.eq.s32.totalorder %s28, 0
        // Predicated region
        $region45: #{tpu_custom_call.1} parent=31 // pred_check
          %p283 = pneg %p282
        $region46: #{tpu_custom_call.1} parent=31 // pred_check_branch
          %285 = sbr.rel (%p283) target = $region48
        $region47: #{tpu_custom_call.1} parent=31 // pred_region
          %286 = vst [vmem:[#allocation2] sm:$0xff] 0.0
          %287 = vst [vmem:[#allocation2 + $0x8] sm:$0xff] 0.0
          %288 = vst [vmem:[#allocation2 + $0x10] sm:$0xff] 0.0
          %289 = vst [vmem:[#allocation2 + $0x18] sm:$0xff] 0.0
          %290 = vst [vmem:[#allocation2 + $0x20] sm:$0xff] 0.0
          %291 = vst [vmem:[#allocation2 + $0x28] sm:$0xff] 0.0
          %292 = vst [vmem:[#allocation2 + $0x30] sm:$0xff] 0.0
          %293 = vst [vmem:[#allocation2 + $0x38] sm:$0xff] 0.0
          %294 = vst [vmem:[#allocation2 + $0x40] sm:$0xff] 0.0
          %295 = vst [vmem:[#allocation2 + $0x48] sm:$0xff] 0.0
          %296 = vst [vmem:[#allocation2 + $0x50] sm:$0xff] 0.0
          %297 = vst [vmem:[#allocation2 + $0x58] sm:$0xff] 0.0
          %298 = vst [vmem:[#allocation2 + $0x60] sm:$0xff] 0.0
          %299 = vst [vmem:[#allocation2 + $0x68] sm:$0xff] 0.0
          %300 = vst [vmem:[#allocation2 + $0x70] sm:$0xff] 0.0
          %301 = vst [vmem:[#allocation2 + $0x78] sm:$0xff] 0.0
          %302 = vst [vmem:[#allocation2 + $0x80] sm:$0xff] 0.0
          %303 = vst [vmem:[#allocation2 + $0x88] sm:$0xff] 0.0
          %304 = vst [vmem:[#allocation2 + $0x90] sm:$0xff] 0.0
          %305 = vst [vmem:[#allocation2 + $0x98] sm:$0xff] 0.0
          %306 = vst [vmem:[#allocation2 + $0xa0] sm:$0xff] 0.0
          %307 = vst [vmem:[#allocation2 + $0xa8] sm:$0xff] 0.0
          %308 = vst [vmem:[#allocation2 + $0xb0] sm:$0xff] 0.0
          %309 = vst [vmem:[#allocation2 + $0xb8] sm:$0xff] 0.0
          %310 = vst [vmem:[#allocation2 + $0xc0] sm:$0xff] 0.0
          %311 = vst [vmem:[#allocation2 + $0xc8] sm:$0xff] 0.0
          %312 = vst [vmem:[#allocation2 + $0xd0] sm:$0xff] 0.0
          %313 = vst [vmem:[#allocation2 + $0xd8] sm:$0xff] 0.0
          %314 = vst [vmem:[#allocation2 + $0xe0] sm:$0xff] 0.0
          %315 = vst [vmem:[#allocation2 + $0xe8] sm:$0xff] 0.0
          %316 = vst [vmem:[#allocation2 + $0xf0] sm:$0xff] 0.0
          %317 = vst [vmem:[#allocation2 + $0xf8] sm:$0xff] 0.0
        $region48: #{tpu_custom_call.1} parent=31 // pred_fallthru
          _
        %v318 = vld [vmem:[#allocation2] sm:$0xff]
        %v319 = vld [vmem:[#allocation2 + $0x8] sm:$0xff]
        %v320 = vld [vmem:[#allocation2 + $0x10] sm:$0xff]
        %v321 = vld [vmem:[#allocation2 + $0x18] sm:$0xff]
        %v322 = vld [vmem:[#allocation2 + $0x20] sm:$0xff]
        %v323 = vld [vmem:[#allocation2 + $0x28] sm:$0xff]
        %v324 = vld [vmem:[#allocation2 + $0x30] sm:$0xff]
        %v325 = vld [vmem:[#allocation2 + $0x38] sm:$0xff]
        %v326 = vld [vmem:[#allocation2 + $0x40] sm:$0xff]
        %v327 = vld [vmem:[#allocation2 + $0x48] sm:$0xff]
        %v328 = vld [vmem:[#allocation2 + $0x50] sm:$0xff]
        %v329 = vld [vmem:[#allocation2 + $0x58] sm:$0xff]
        %v330 = vld [vmem:[#allocation2 + $0x60] sm:$0xff]
        %v331 = vld [vmem:[#allocation2 + $0x68] sm:$0xff]
        %v332 = vld [vmem:[#allocation2 + $0x70] sm:$0xff]
        %v333 = vld [vmem:[#allocation2 + $0x78] sm:$0xff]
        %v334 = vld [vmem:[#allocation2 + $0x80] sm:$0xff]
        %v335 = vld [vmem:[#allocation2 + $0x88] sm:$0xff]
        %v336 = vld [vmem:[#allocation2 + $0x90] sm:$0xff]
        %v337 = vld [vmem:[#allocation2 + $0x98] sm:$0xff]
        %v338 = vld [vmem:[#allocation2 + $0xa0] sm:$0xff]
        %v339 = vld [vmem:[#allocation2 + $0xa8] sm:$0xff]
        %v340 = vld [vmem:[#allocation2 + $0xb0] sm:$0xff]
        %v341 = vld [vmem:[#allocation2 + $0xb8] sm:$0xff]
        %v342 = vld [vmem:[#allocation2 + $0xc0] sm:$0xff]
        %v343 = vld [vmem:[#allocation2 + $0xc8] sm:$0xff]
        %v344 = vld [vmem:[#allocation2 + $0xd0] sm:$0xff]
        %v345 = vld [vmem:[#allocation2 + $0xd8] sm:$0xff]
        %v346 = vld [vmem:[#allocation2 + $0xe0] sm:$0xff]
        %v347 = vld [vmem:[#allocation2 + $0xe8] sm:$0xff]
        %v348 = vld [vmem:[#allocation2 + $0xf0] sm:$0xff]
        %v349 = vld [vmem:[#allocation2 + $0xf8] sm:$0xff]
        %v350 = vld [vmem:[#allocation3] sm:$0xff]
        %v351 = vld [vmem:[#allocation3 + $0x8] sm:$0xff]
        %v352 = vld [vmem:[#allocation3 + $0x10] sm:$0xff]
        %v353 = vld [vmem:[#allocation3 + $0x18] sm:$0xff]
        %v354 = vld [vmem:[#allocation3 + $0x20] sm:$0xff]
        %v355 = vld [vmem:[#allocation3 + $0x28] sm:$0xff]
        %v356 = vld [vmem:[#allocation3 + $0x30] sm:$0xff]
        %v357 = vld [vmem:[#allocation3 + $0x38] sm:$0xff]
        %v358 = vld [vmem:[#allocation3 + $0x40] sm:$0xff]
        %v359 = vld [vmem:[#allocation3 + $0x48] sm:$0xff]
        %v360 = vld [vmem:[#allocation3 + $0x50] sm:$0xff]
        %v361 = vld [vmem:[#allocation3 + $0x58] sm:$0xff]
        %v362 = vld [vmem:[#allocation3 + $0x60] sm:$0xff]
        %v363 = vld [vmem:[#allocation3 + $0x68] sm:$0xff]
        %v364 = vld [vmem:[#allocation3 + $0x70] sm:$0xff]
        %v365 = vld [vmem:[#allocation3 + $0x78] sm:$0xff]
        %v366 = vld [vmem:[%s239] sm:$0xff]
        %v367 = vld [vmem:[%s239 + $0x8] sm:$0xff]
        %v368 = vld [vmem:[%s239 + $0x10] sm:$0xff]
        %v369 = vld [vmem:[%s239 + $0x18] sm:$0xff]
        %v370 = vld [vmem:[%s239 + $0x20] sm:$0xff]
        %v371 = vld [vmem:[%s239 + $0x28] sm:$0xff]
        %v372 = vld [vmem:[%s239 + $0x30] sm:$0xff]
        %v373 = vld [vmem:[%s239 + $0x38] sm:$0xff]
        %v374 = vld [vmem:[%s239 + $0x40] sm:$0xff]
        %v375 = vld [vmem:[%s239 + $0x48] sm:$0xff]
        %v376 = vld [vmem:[%s239 + $0x50] sm:$0xff]
        %v377 = vld [vmem:[%s239 + $0x58] sm:$0xff]
        %v378 = vld [vmem:[%s239 + $0x60] sm:$0xff]
        %v379 = vld [vmem:[%s239 + $0x68] sm:$0xff]
        %v380 = vld [vmem:[%s239 + $0x70] sm:$0xff]
        %v381 = vld [vmem:[%s239 + $0x78] sm:$0xff]
        %v382 = vld [vmem:[%s239 + $0x80] sm:$0xff]
        %v383 = vld [vmem:[%s239 + $0x88] sm:$0xff]
        %v384 = vld [vmem:[%s239 + $0x90] sm:$0xff]
        %v385 = vld [vmem:[%s239 + $0x98] sm:$0xff]
        %v386 = vld [vmem:[%s239 + $0xa0] sm:$0xff]
        %v387 = vld [vmem:[%s239 + $0xa8] sm:$0xff]
        %v388 = vld [vmem:[%s239 + $0xb0] sm:$0xff]
        %v389 = vld [vmem:[%s239 + $0xb8] sm:$0xff]
        %v390 = vld [vmem:[%s239 + $0xc0] sm:$0xff]
        %v391 = vld [vmem:[%s239 + $0xc8] sm:$0xff]
        %v392 = vld [vmem:[%s239 + $0xd0] sm:$0xff]
        %v393 = vld [vmem:[%s239 + $0xd8] sm:$0xff]
        %v394 = vld [vmem:[%s239 + $0xe0] sm:$0xff]
        %v395 = vld [vmem:[%s239 + $0xe8] sm:$0xff]
        %v396 = vld [vmem:[%s239 + $0xf0] sm:$0xff]
        %v397 = vld [vmem:[%s239 + $0xf8] sm:$0xff]
        %398 = vmatprep.subr.mxu0 %v397
        %399 = vmatpush1.msra.mxu0 %v396
        %400 = vmatprep.subr.mxu0 %v395
        %401 = vmatpush1.msra.mxu0 %v394
        %402 = vmatprep.subr.mxu0 %v393
        %403 = vmatpush1.msra.mxu0 %v392
        %404 = vmatprep.subr.mxu0 %v391
        %405 = vmatpush1.msra.mxu0 %v390
        %406 = vmatprep.subr.mxu0 %v389
        %407 = vmatpush1.msra.mxu0 %v388
        %408 = vmatprep.subr.mxu0 %v387
        %409 = vmatpush1.msra.mxu0 %v386
        %410 = vmatprep.subr.mxu0 %v385
        %411 = vmatpush1.msra.mxu0 %v384
        %412 = vmatprep.subr.mxu0 %v383
        %413 = vmatpush1.msra.mxu0 %v382
        %414 = vmatprep.subr.mxu0 %v381
        %415 = vmatpush1.msra.mxu0 %v380
        %416 = vmatprep.subr.mxu0 %v379
        %417 = vmatpush1.msra.mxu0 %v378
        %418 = vmatprep.subr.mxu0 %v377
        %419 = vmatpush1.msra.mxu0 %v376
        %420 = vmatprep.subr.mxu0 %v375
        %421 = vmatpush1.msra.mxu0 %v374
        %422 = vmatprep.subr.mxu0 %v373
        %423 = vmatpush1.msra.mxu0 %v372
        %424 = vmatprep.subr.mxu0 %v371
        %425 = vmatpush1.msra.mxu0 %v370
        %426 = vmatprep.subr.mxu0 %v369
        %427 = vmatpush1.msra.mxu0 %v368
        %428 = vmatprep.subr.mxu0 %v367
        %429 = vmatpush1.msra.mxu0 %v366
        %430 = vmatprep.subr.mxu0 0.0
        %431 = vmatpush2.msra.mxu0 0.0
        %432 = vmatprep.subr.mxu0 0.0
        %433 = vmatpush2.msra.mxu0 0.0
        %434 = vmatprep.subr.mxu0 0.0
        %435 = vmatpush2.msra.mxu0 0.0
        %436 = vmatprep.subr.mxu0 0.0
        %437 = vmatpush2.msra.mxu0 0.0
        %438 = vmatprep.subr.mxu0 0.0
        %439 = vmatpush2.msra.mxu0 0.0
        %440 = vmatprep.subr.mxu0 0.0
        %441 = vmatpush2.msra.mxu0 0.0
        %442 = vmatprep.subr.mxu0 0.0
        %443 = vmatpush2.msra.mxu0 0.0
        %444 = vmatprep.subr.mxu0 0.0
        %445 = vmatpush2.msra.mxu0 0.0
        %446 = vmatprep.subr.mxu0 0.0
        %447 = vmatpush2.msra.mxu0 0.0
        %448 = vmatprep.subr.mxu0 0.0
        %449 = vmatpush2.msra.mxu0 0.0
        %450 = vmatprep.subr.mxu0 0.0
        %451 = vmatpush2.msra.mxu0 0.0
        %452 = vmatprep.subr.mxu0 0.0
        %453 = vmatpush2.msra.mxu0 0.0
        %454 = vmatprep.subr.mxu0 0.0
        %455 = vmatpush2.msra.mxu0 0.0
        %456 = vmatprep.subr.mxu0 0.0
        %457 = vmatpush2.msra.mxu0 0.0
        %458 = vmatprep.subr.mxu0 0.0
        %459 = vmatpush2.msra.mxu0 0.0
        %460 = vmatprep.subr.mxu0 0.0
        %461 = vmatpush2.msra.mxu0 0.0
        %462 = vmatprep.mubr.f32.mxu0 0.0
        %463 = vmatmul.mubr.f32.gmra.mxu0 %v350
        %v464 = vpop.f32.mrf.mxu0
        %v465 = vadd.f32 0.0, %v464
        %v466 = vpop.f32.mrf.mxu0
        %v467 = vadd.f32 0.0, %v466
        %468 = vmatprep.mubr.f32.mxu0 0.0
        %469 = vmatmul.mubr.f32.gmra.mxu0 %v351
        %v470 = vpop.f32.mrf.mxu0
        %v471 = vadd.f32 0.0, %v470
        %v472 = vpop.f32.mrf.mxu0
        %v473 = vadd.f32 0.0, %v472
        %474 = vmatprep.mubr.f32.mxu0 0.0
        %475 = vmatmul.mubr.f32.gmra.mxu0 %v352
        %v476 = vpop.f32.mrf.mxu0
        %v477 = vadd.f32 0.0, %v476
        %v478 = vpop.f32.mrf.mxu0
        %v479 = vadd.f32 0.0, %v478
        %480 = vmatprep.mubr.f32.mxu0 0.0
        %481 = vmatmul.mubr.f32.gmra.mxu0 %v353
        %v482 = vpop.f32.mrf.mxu0
        %v483 = vadd.f32 0.0, %v482
        %v484 = vpop.f32.mrf.mxu0
        %v485 = vadd.f32 0.0, %v484
        %486 = vmatprep.mubr.f32.mxu0 0.0
        %487 = vmatmul.mubr.f32.gmra.mxu0 %v354
        %v488 = vpop.f32.mrf.mxu0
        %v489 = vadd.f32 0.0, %v488
        %v490 = vpop.f32.mrf.mxu0
        %v491 = vadd.f32 0.0, %v490
        %492 = vmatprep.mubr.f32.mxu0 0.0
        %493 = vmatmul.mubr.f32.gmra.mxu0 %v355
        %v494 = vpop.f32.mrf.mxu0
        %v495 = vadd.f32 0.0, %v494
        %v496 = vpop.f32.mrf.mxu0
        %v497 = vadd.f32 0.0, %v496
        %498 = vmatprep.mubr.f32.mxu0 0.0
        %499 = vmatmul.mubr.f32.gmra.mxu0 %v356
        %v500 = vpop.f32.mrf.mxu0
        %v501 = vadd.f32 0.0, %v500
        %v502 = vpop.f32.mrf.mxu0
        %v503 = vadd.f32 0.0, %v502
        %504 = vmatprep.mubr.f32.mxu0 0.0
        %505 = vmatmul.mubr.f32.gmra.mxu0 %v357
        %v506 = vpop.f32.mrf.mxu0
        %v507 = vadd.f32 0.0, %v506
        %v508 = vpop.f32.mrf.mxu0
        %v509 = vadd.f32 0.0, %v508
        %510 = vmatprep.mubr.f32.mxu0 0.0
        %511 = vmatmul.mubr.f32.gmra.mxu0 %v358
        %v512 = vpop.f32.mrf.mxu0
        %v513 = vadd.f32 0.0, %v512
        %v514 = vpop.f32.mrf.mxu0
        %v515 = vadd.f32 0.0, %v514
        %516 = vmatprep.mubr.f32.mxu0 0.0
        %517 = vmatmul.mubr.f32.gmra.mxu0 %v359
        %v518 = vpop.f32.mrf.mxu0
        %v519 = vadd.f32 0.0, %v518
        %v520 = vpop.f32.mrf.mxu0
        %v521 = vadd.f32 0.0, %v520
        %522 = vmatprep.mubr.f32.mxu0 0.0
        %523 = vmatmul.mubr.f32.gmra.mxu0 %v360
        %v524 = vpop.f32.mrf.mxu0
        %v525 = vadd.f32 0.0, %v524
        %v526 = vpop.f32.mrf.mxu0
        %v527 = vadd.f32 0.0, %v526
        %528 = vmatprep.mubr.f32.mxu0 0.0
        %529 = vmatmul.mubr.f32.gmra.mxu0 %v361
        %v530 = vpop.f32.mrf.mxu0
        %v531 = vadd.f32 0.0, %v530
        %v532 = vpop.f32.mrf.mxu0
        %v533 = vadd.f32 0.0, %v532
        %534 = vmatprep.mubr.f32.mxu0 0.0
        %535 = vmatmul.mubr.f32.gmra.mxu0 %v362
        %v536 = vpop.f32.mrf.mxu0
        %v537 = vadd.f32 0.0, %v536
        %v538 = vpop.f32.mrf.mxu0
        %v539 = vadd.f32 0.0, %v538
        %540 = vmatprep.mubr.f32.mxu0 0.0
        %541 = vmatmul.mubr.f32.gmra.mxu0 %v363
        %v542 = vpop.f32.mrf.mxu0
        %v543 = vadd.f32 0.0, %v542
        %v544 = vpop.f32.mrf.mxu0
        %v545 = vadd.f32 0.0, %v544
        %546 = vmatprep.mubr.f32.mxu0 0.0
        %547 = vmatmul.mubr.f32.gmra.mxu0 %v364
        %v548 = vpop.f32.mrf.mxu0
        %v549 = vadd.f32 0.0, %v548
        %v550 = vpop.f32.mrf.mxu0
        %v551 = vadd.f32 0.0, %v550
        %552 = vmatprep.mubr.f32.mxu0 0.0
        %553 = vmatmul.mubr.f32.gmra.mxu0 %v365
        %v554 = vpop.f32.mrf.mxu0
        %v555 = vadd.f32 0.0, %v554
        %v556 = vpop.f32.mrf.mxu0
        %v557 = vadd.f32 0.0, %v556
        %558 = vdwg.mxu0
        %v559 = vadd.f32 %v318, %v465
        %v560 = vadd.f32 %v319, %v467
        %v561 = vadd.f32 %v320, %v471
        %v562 = vadd.f32 %v321, %v473
        %v563 = vadd.f32 %v322, %v477
        %v564 = vadd.f32 %v323, %v479
        %v565 = vadd.f32 %v324, %v483
        %v566 = vadd.f32 %v325, %v485
        %v567 = vadd.f32 %v326, %v489
        %v568 = vadd.f32 %v327, %v491
        %v569 = vadd.f32 %v328, %v495
        %v570 = vadd.f32 %v329, %v497
        %v571 = vadd.f32 %v330, %v501
        %v572 = vadd.f32 %v331, %v503
        %v573 = vadd.f32 %v332, %v507
        %v574 = vadd.f32 %v333, %v509
        %v575 = vadd.f32 %v334, %v513
        %v576 = vadd.f32 %v335, %v515
        %v577 = vadd.f32 %v336, %v519
        %v578 = vadd.f32 %v337, %v521
        %v579 = vadd.f32 %v338, %v525
        %v580 = vadd.f32 %v339, %v527
        %v581 = vadd.f32 %v340, %v531
        %v582 = vadd.f32 %v341, %v533
        %v583 = vadd.f32 %v342, %v537
        %v584 = vadd.f32 %v343, %v539
        %v585 = vadd.f32 %v344, %v543
        %v586 = vadd.f32 %v345, %v545
        %v587 = vadd.f32 %v346, %v549
        %v588 = vadd.f32 %v347, %v551
        %v589 = vadd.f32 %v348, %v555
        %v590 = vadd.f32 %v349, %v557
        %591 = vst [vmem:[#allocation2] sm:$0xff] %v559
        %592 = vst [vmem:[#allocation2 + $0x8] sm:$0xff] %v560
        %593 = vst [vmem:[#allocation2 + $0x10] sm:$0xff] %v561
        %594 = vst [vmem:[#allocation2 + $0x18] sm:$0xff] %v562
        %595 = vst [vmem:[#allocation2 + $0x20] sm:$0xff] %v563
        %596 = vst [vmem:[#allocation2 + $0x28] sm:$0xff] %v564
        %597 = vst [vmem:[#allocation2 + $0x30] sm:$0xff] %v565
        %598 = vst [vmem:[#allocation2 + $0x38] sm:$0xff] %v566
        %599 = vst [vmem:[#allocation2 + $0x40] sm:$0xff] %v567
        %600 = vst [vmem:[#allocation2 + $0x48] sm:$0xff] %v568
        %601 = vst [vmem:[#allocation2 + $0x50] sm:$0xff] %v569
        %602 = vst [vmem:[#allocation2 + $0x58] sm:$0xff] %v570
        %603 = vst [vmem:[#allocation2 + $0x60] sm:$0xff] %v571
        %604 = vst [vmem:[#allocation2 + $0x68] sm:$0xff] %v572
        %605 = vst [vmem:[#allocation2 + $0x70] sm:$0xff] %v573
        %606 = vst [vmem:[#allocation2 + $0x78] sm:$0xff] %v574
        %607 = vst [vmem:[#allocation2 + $0x80] sm:$0xff] %v575
        %608 = vst [vmem:[#allocation2 + $0x88] sm:$0xff] %v576
        %609 = vst [vmem:[#allocation2 + $0x90] sm:$0xff] %v577
        %610 = vst [vmem:[#allocation2 + $0x98] sm:$0xff] %v578
        %611 = vst [vmem:[#allocation2 + $0xa0] sm:$0xff] %v579
        %612 = vst [vmem:[#allocation2 + $0xa8] sm:$0xff] %v580
        %613 = vst [vmem:[#allocation2 + $0xb0] sm:$0xff] %v581
        %614 = vst [vmem:[#allocation2 + $0xb8] sm:$0xff] %v582
        %615 = vst [vmem:[#allocation2 + $0xc0] sm:$0xff] %v583
        %616 = vst [vmem:[#allocation2 + $0xc8] sm:$0xff] %v584
        %617 = vst [vmem:[#allocation2 + $0xd0] sm:$0xff] %v585
        %618 = vst [vmem:[#allocation2 + $0xd8] sm:$0xff] %v586
        %619 = vst [vmem:[#allocation2 + $0xe0] sm:$0xff] %v587
        %620 = vst [vmem:[#allocation2 + $0xe8] sm:$0xff] %v588
        %621 = vst [vmem:[#allocation2 + $0xf0] sm:$0xff] %v589
        %622 = vst [vmem:[#allocation2 + $0xf8] sm:$0xff] %v590
        // Predicated region
        $region49: #{tpu_custom_call.1} parent=31 // pred_check
          %p623 = pneg %p282
        $region50: #{tpu_custom_call.1} parent=31 // pred_check_branch
          %625 = sbr.rel (%p623) target = $region52
        $region51: #{tpu_custom_call.1} parent=31 // pred_region
          %v626 = vld [vmem:[#allocation2] sm:$0xff]
          %v627 = vld [vmem:[#allocation2 + $0x8] sm:$0xff]
          %v628 = vld [vmem:[#allocation2 + $0x10] sm:$0xff]
          %v629 = vld [vmem:[#allocation2 + $0x18] sm:$0xff]
          %v630 = vld [vmem:[#allocation2 + $0x20] sm:$0xff]
          %v631 = vld [vmem:[#allocation2 + $0x28] sm:$0xff]
          %v632 = vld [vmem:[#allocation2 + $0x30] sm:$0xff]
          %v633 = vld [vmem:[#allocation2 + $0x38] sm:$0xff]
          %v634 = vld [vmem:[#allocation2 + $0x40] sm:$0xff]
          %v635 = vld [vmem:[#allocation2 + $0x48] sm:$0xff]
          %v636 = vld [vmem:[#allocation2 + $0x50] sm:$0xff]
          %v637 = vld [vmem:[#allocation2 + $0x58] sm:$0xff]
          %v638 = vld [vmem:[#allocation2 + $0x60] sm:$0xff]
          %v639 = vld [vmem:[#allocation2 + $0x68] sm:$0xff]
          %v640 = vld [vmem:[#allocation2 + $0x70] sm:$0xff]
          %v641 = vld [vmem:[#allocation2 + $0x78] sm:$0xff]
          %v642 = vld [vmem:[#allocation2 + $0x80] sm:$0xff]
          %v643 = vld [vmem:[#allocation2 + $0x88] sm:$0xff]
          %v644 = vld [vmem:[#allocation2 + $0x90] sm:$0xff]
          %v645 = vld [vmem:[#allocation2 + $0x98] sm:$0xff]
          %v646 = vld [vmem:[#allocation2 + $0xa0] sm:$0xff]
          %v647 = vld [vmem:[#allocation2 + $0xa8] sm:$0xff]
          %v648 = vld [vmem:[#allocation2 + $0xb0] sm:$0xff]
          %v649 = vld [vmem:[#allocation2 + $0xb8] sm:$0xff]
          %v650 = vld [vmem:[#allocation2 + $0xc0] sm:$0xff]
          %v651 = vld [vmem:[#allocation2 + $0xc8] sm:$0xff]
          %v652 = vld [vmem:[#allocation2 + $0xd0] sm:$0xff]
          %v653 = vld [vmem:[#allocation2 + $0xd8] sm:$0xff]
          %v654 = vld [vmem:[#allocation2 + $0xe0] sm:$0xff]
          %v655 = vld [vmem:[#allocation2 + $0xe8] sm:$0xff]
          %v656 = vld [vmem:[#allocation2 + $0xf0] sm:$0xff]
          %v657 = vld [vmem:[#allocation2 + $0xf8] sm:$0xff]
          %v658 = vld [vmem:[%s248] sm:$0x3]
          %v660 = vlaneseq
          %v661 = vshrl.u32 %v660, 7
          %v662 = vsub.s32 0, %v661
          %v663 = vrot.slane %v658, %v662
          %v664 = vlaneseq
          %v665 = vshrl.u32 %v664, 7
          %v666 = vsub.s32 1, %v665
          %v667 = vrot.slane %v658, %v666
          %v670 = vadd.f32 %v626, %v663
          %v671 = vadd.f32 %v627, %v667
          %v672 = vadd.f32 %v628, %v663
          %v673 = vadd.f32 %v629, %v667
          %v674 = vadd.f32 %v630, %v663
          %v675 = vadd.f32 %v631, %v667
          %v676 = vadd.f32 %v632, %v663
          %v677 = vadd.f32 %v633, %v667
          %v678 = vadd.f32 %v634, %v663
          %v679 = vadd.f32 %v635, %v667
          %v680 = vadd.f32 %v636, %v663
          %v681 = vadd.f32 %v637, %v667
          %v682 = vadd.f32 %v638, %v663
          %v683 = vadd.f32 %v639, %v667
          %v684 = vadd.f32 %v640, %v663
          %v685 = vadd.f32 %v641, %v667
          %v686 = vadd.f32 %v642, %v663
          %v687 = vadd.f32 %v643, %v667
          %v688 = vadd.f32 %v644, %v663
          %v689 = vadd.f32 %v645, %v667
          %v690 = vadd.f32 %v646, %v663
          %v691 = vadd.f32 %v647, %v667
          %v692 = vadd.f32 %v648, %v663
          %v693 = vadd.f32 %v649, %v667
          %v694 = vadd.f32 %v650, %v663
          %v695 = vadd.f32 %v651, %v667
          %v696 = vadd.f32 %v652, %v663
          %v697 = vadd.f32 %v653, %v667
          %v698 = vadd.f32 %v654, %v663
          %v699 = vadd.f32 %v655, %v667
          %v700 = vadd.f32 %v656, %v663
          %v701 = vadd.f32 %v657, %v667
          %702 = vst [vmem:[%s275] sm:$0xff] %v670
          %703 = vst [vmem:[%s275 + $0x8] sm:$0xff] %v671
          %704 = vst [vmem:[%s275 + $0x10] sm:$0xff] %v672
          %705 = vst [vmem:[%s275 + $0x18] sm:$0xff] %v673
          %706 = vst [vmem:[%s275 + $0x20] sm:$0xff] %v674
          %707 = vst [vmem:[%s275 + $0x28] sm:$0xff] %v675
          %708 = vst [vmem:[%s275 + $0x30] sm:$0xff] %v676
          %709 = vst [vmem:[%s275 + $0x38] sm:$0xff] %v677
          %710 = vst [vmem:[%s275 + $0x40] sm:$0xff] %v678
          %711 = vst [vmem:[%s275 + $0x48] sm:$0xff] %v679
          %712 = vst [vmem:[%s275 + $0x50] sm:$0xff] %v680
          %713 = vst [vmem:[%s275 + $0x58] sm:$0xff] %v681
          %714 = vst [vmem:[%s275 + $0x60] sm:$0xff] %v682
          %715 = vst [vmem:[%s275 + $0x68] sm:$0xff] %v683
          %716 = vst [vmem:[%s275 + $0x70] sm:$0xff] %v684
          %717 = vst [vmem:[%s275 + $0x78] sm:$0xff] %v685
          %718 = vst [vmem:[%s275 + $0x80] sm:$0xff] %v686
          %719 = vst [vmem:[%s275 + $0x88] sm:$0xff] %v687
          %720 = vst [vmem:[%s275 + $0x90] sm:$0xff] %v688
          %721 = vst [vmem:[%s275 + $0x98] sm:$0xff] %v689
          %722 = vst [vmem:[%s275 + $0xa0] sm:$0xff] %v690
          %723 = vst [vmem:[%s275 + $0xa8] sm:$0xff] %v691
          %724 = vst [vmem:[%s275 + $0xb0] sm:$0xff] %v692
          %725 = vst [vmem:[%s275 + $0xb8] sm:$0xff] %v693
          %726 = vst [vmem:[%s275 + $0xc0] sm:$0xff] %v694
          %727 = vst [vmem:[%s275 + $0xc8] sm:$0xff] %v695
          %728 = vst [vmem:[%s275 + $0xd0] sm:$0xff] %v696
          %729 = vst [vmem:[%s275 + $0xd8] sm:$0xff] %v697
          %730 = vst [vmem:[%s275 + $0xe0] sm:$0xff] %v698
          %731 = vst [vmem:[%s275 + $0xe8] sm:$0xff] %v699
          %732 = vst [vmem:[%s275 + $0xf0] sm:$0xff] %v700
          %733 = vst [vmem:[%s275 + $0xf8] sm:$0xff] %v701
        $region52: #{tpu_custom_call.1} parent=31 // pred_fallthru
          _
        %s734 = sand.u32 %s132, 1
        %s735 = scalar_lea.sflag [#allocation5], %s734
        %s736 = sand.u32 %s132, 1
        %s737 = smul.addr %s736, 256
        %s738 = scalar_lea.vmem [#allocation9], %s737
        // Predicated region
        $region53: #{tpu_custom_call.1} parent=31 // pred_check
          %p739 = pneg %p142
        $region54: #{tpu_custom_call.1} parent=31 // pred_check_branch
          %741 = sbr.rel (%p739) target = $region56
        $region55: #{tpu_custom_call.1} parent=31 // pred_region
          %s742 = smul.u32 16, %s26
          %s743 = smul.u32 2, %s27
          %s745 = ssub.s32 4096, 4096
          %746 = vsyncadd %s735, %s745
          %s747 = smul.addr %s742, 4
          %s748 = sadd.s32 %s743, %s747
          %s749 = smul.addr %s748, 128
          %s750 = scalar_lea.hbm %s3, %s749
          %s751 = sshll.u32 %s738, 4
          %s752 = int_to_ptr.vmem [resolvable:$true] %s751
          %757 = dma.vmem_to_hbm [thread:$0]  %s752, 4096, %s750, %s735, 256, 512, 16
        $region56: #{tpu_custom_call.1} parent=31 // pred_fallthru
          _
      $region32: #{tpu_custom_call.1} parent=5 // pred_fallthru
        _
      %p758 = scmp.le.s32.totalorder 2, %s16
      // Predicated region
      $region57: #{tpu_custom_call.1} parent=5 // pred_check
        %p759 = pneg %p758
      $region58: #{tpu_custom_call.1} parent=5 // pred_check_branch
        %761 = sbr.rel (%p759) target = $region60
      $region59: #{tpu_custom_call.1} parent=5 // pred_region
        %s762 = ssub.s32 %s16, 2
        // Predicated region
        $region61: #{tpu_custom_call.1} parent=59 // pred_check
          %p763 = pneg %p148
        $region62: #{tpu_custom_call.1} parent=59 // pred_check_branch
          %765 = sbr.rel (%p763) target = $region64
        $region63: #{tpu_custom_call.1} parent=59 // pred_region
          %s766 = sand.u32 %s133, 1
          %s767 = scalar_lea.sflag [#allocation5], %s766
          %s768 = sand.u32 %s133, 1
          %s769 = smul.addr %s768, 256
          %s770 = scalar_lea.vmem [#allocation9], %s769
          %771 = dma.done %s767, 4096
        $region64: #{tpu_custom_call.1} parent=59 // pred_fallthru
          _
      $region60: #{tpu_custom_call.1} parent=5 // pred_fallthru
        _
    $region6: #{tpu_custom_call.1} parent=1 // loop_footer
      %s20 = sadd.s32 1, %s16
    $region7: #{tpu_custom_call.1} parent=1 // loop_footer_branch
      %15 = sbr.rel target = $region3
    $region8: #{tpu_custom_call.1} parent=1 // loop_exit
      _
    %772 = vsyncpa [#allocation4], 1
    %s773 = scalar_lea.sflag [#allocation4], 1
    %774 = vsyncpa %s773, 1
    %775 = vsyncpa [#allocation7], 1
    %s776 = scalar_lea.sflag [#allocation7], 1
    %777 = vsyncpa %s776, 1
    %778 = vsyncpa [#allocation5], 1
    %s779 = scalar_lea.sflag [#allocation5], 1
    %780 = vsyncpa %s779, 1

</llo_original>
